<compile_context>
chip_gen: v5e
topology: v5e:2x2
jax: 0.10.0
libtpu: 0.0.40
codegen_flags: <defaults>
</compile_context>

<pallas_src>
import jax
import jax.numpy as jnp
from jax.experimental import pallas as pl
from jax.experimental.pallas import tpu as pltpu


def _round_up(n, m):
    return ((n + m - 1) // m) * m


def _pad_to(a, shape):
    pads = [(0, s - d) for d, s in zip(a.shape, shape)]
    if all(p == (0, 0) for p in pads):
        return a
    return jnp.pad(a, pads)  # zero padding (required invariant for K rows)


def _softplus(v):
    # Numerically-stable softplus, equal to log(exp(v) + 1) for in-range v.
    return jnp.maximum(v, 0.0) + jnp.log(jnp.exp(-jnp.abs(v)) + 1.0)


def mlp_kernel(x_ref, w1_ref, b1_ref, w2_ref, b2_ref, w3_ref, b3_ref, o_ref):
    w_dt = w1_ref.dtype
    x = x_ref[...]
    h1 = _softplus(
        jnp.dot(x.astype(w_dt), w1_ref[...], preferred_element_type=jnp.float32)
        + b1_ref[...]
    )
    h2 = _softplus(
        jnp.dot(h1.astype(w_dt), w2_ref[...], preferred_element_type=jnp.float32)
        + b2_ref[...]
    )
    o_ref[...] = (
        jnp.dot(h2.astype(w_dt), w3_ref[...], preferred_element_type=jnp.float32)
        + b3_ref[...]
    ).astype(o_ref.dtype)


def net_forward(x, params, tb=512, use_bf16_weights=False):
    """Fused, batch-tiled forward pass of Net.

    x      : (batch, input_size) f32
    params : (w1 (in,hid), b1 (1,hid), w2 (hid,hid), b2 (1,hid),
              w3 (hid,out), b3 (1,out))   -- weights pre-transposed vs PyTorch.
    """
    w1, b1, w2, b2, w3, b3 = params
    batch, in_f = x.shape
    hid_f = w1.shape[1]
    out_f = w3.shape[1]

    # Lane-dense padded OUTPUT dims only (multiples of 128). K of layer 1 stays
    # at the real in_f (full-dim block is legal; MXU handles K<128 in one pass).
    hid_p = _round_up(hid_f, 128)
    out_p = _round_up(out_f, 128)

    # Batch tile: multiple of 8 sublanes; capped so the grid has >=2 steps when
    # the batch allows (keeps both v7x TensorCores busy under "parallel").
    tb = max(8, _round_up(min(tb, max(batch, 1)), 8))
    tb = min(tb, max(8, _round_up(pl.cdiv(batch, 2), 8)))
    grid = (pl.cdiv(batch, tb),)

    w_dt = jnp.bfloat16 if use_bf16_weights else jnp.float32
    # Padded K rows of w2/w3 are ZERO -> they annihilate softplus(0)=ln(2) in
    # the padded hidden columns.  Do not change this to non-zero padding.
    w1_p = _pad_to(w1, (in_f, hid_p)).astype(w_dt)
    b1_p = _pad_to(b1, (1, hid_p)).astype(jnp.float32)
    w2_p = _pad_to(w2, (hid_p, hid_p)).astype(w_dt)
    b2_p = _pad_to(b2, (1, hid_p)).astype(jnp.float32)
    w3_p = _pad_to(w3, (hid_p, out_p)).astype(w_dt)
    b3_p = _pad_to(b3, (1, out_p)).astype(jnp.float32)

    # Weights/biases: full-array blocks, constant index_map -> VMEM-resident,
    # single-buffered (block index never changes, double-buffering buys nothing).
    def resident(shape):
        return pl.BlockSpec(shape, lambda i: (0, 0), pipeline_mode=pl.Buffered(1))

    # Explicit VMEM budget (default scoped limit is 16/32 MiB, well below phys).
    w_item = 2 if use_bf16_weights else 4
    weight_bytes = w_item * (in_f * hid_p + hid_p * hid_p + hid_p * out_p) + 4 * (
        2 * hid_p + out_p
    )
    act_bytes = 4 * 2 * tb * (in_f + out_p)  # double-buffered x / out tiles
    interm_bytes = 4 * 4 * tb * hid_p  # h1/h2/temps allowance
    vmem_limit = int(
        min(64 * 2**20, max(2 * (weight_bytes + act_bytes + interm_bytes), 16 * 2**20))
    )

    cost = pl.CostEstimate(
        flops=2 * batch * (in_f * hid_p + hid_p * hid_p + hid_p * out_p),
        transcendentals=4 * batch * hid_p,  # exp+log per softplus, two softplus
        bytes_accessed=4 * batch * (in_f + out_p) + weight_bytes,
    )

    out = pl.pallas_call(
        mlp_kernel,
        out_shape=jax.ShapeDtypeStruct((batch, out_p), jnp.float32),
        grid=grid,
        in_specs=[
            pl.BlockSpec((tb, in_f), lambda i: (i, 0)),
            resident((in_f, hid_p)),
            resident((1, hid_p)),
            resident((hid_p, hid_p)),
            resident((1, hid_p)),
            resident((hid_p, out_p)),
            resident((1, out_p)),
        ],
        out_specs=pl.BlockSpec((tb, out_p), lambda i: (i, 0)),
        compiler_params=pltpu.CompilerParams(
            dimension_semantics=("parallel",),
            vmem_limit_bytes=vmem_limit,
        ),
        cost_estimate=cost,
    )(x, w1_p, b1_p, w2_p, b2_p, w3_p, b3_p)

    # Only the padded output columns are dropped; batch dim is untouched.
    return out[:, :out_f]


def init_params(key, input_size, hidden_size, output_size):
    """Deterministic PyTorch-Linear-style init (uniform +-1/sqrt(fan_in)).
    Weights are returned already transposed to (in, out)."""
    ks = jax.random.split(key, 6)

    def linear(kw, kb, fan_in, fan_out):
        bound = 1.0 / jnp.sqrt(jnp.float32(fan_in))
        w = jax.random.uniform(kw, (fan_in, fan_out), jnp.float32, -bound, bound)
        b = jax.random.uniform(kb, (1, fan_out), jnp.float32, -bound, bound)
        return w, b

    w1, b1 = linear(ks[0], ks[1], input_size, hidden_size)
    w2, b2 = linear(ks[2], ks[3], hidden_size, hidden_size)
    w3, b3 = linear(ks[4], ks[5], hidden_size, output_size)
    return (w1, b1, w2, b2, w3, b3)


def reference_forward(x, params):
    # Mirrors the PyTorch reference: softplus(x) = log(exp(x) + 1).
    w1, b1, w2, b2, w3, b3 = params
    h1 = jnp.log(jnp.exp(x @ w1 + b1) + 1.0)
    h2 = jnp.log(jnp.exp(h1 @ w2 + b2) + 1.0)
    return h2 @ w3 + b3


if __name__ == "__main__":
    input_size, hidden_size, output_size = 16, 32, 8
    batch = 8

    key = jax.random.PRNGKey(0)
    k_x, k_p = jax.random.split(key)
    x = jax.random.normal(k_x, (batch, input_size), jnp.float32)
    params = init_params(k_p, input_size, hidden_size, output_size)

    out = net_forward(x, params)
    out = jax.block_until_ready(out)

    ref = reference_forward(x, params)
    assert out.shape == (batch, output_size)
    assert jnp.allclose(out, ref, atol=1e-4, rtol=1e-4)

    print("KERNEL_OK")
</pallas_src>

<mosaic_0001>
module attributes {stable_mosaic.version = 11 : i64} {
  func.func @mlp_kernel(%arg0: i32, %arg1: memref<8x16xf32, #tpu.memory_space<vmem>>, %arg2: memref<16x128xf32, #tpu.memory_space<vmem>>, %arg3: memref<1x128xf32, #tpu.memory_space<vmem>>, %arg4: memref<128x128xf32, #tpu.memory_space<vmem>>, %arg5: memref<1x128xf32, #tpu.memory_space<vmem>>, %arg6: memref<128x128xf32, #tpu.memory_space<vmem>>, %arg7: memref<1x128xf32, #tpu.memory_space<vmem>>, %arg8: memref<8x128xf32, #tpu.memory_space<vmem>>) attributes {dimension_semantics = [#tpu.dimension_semantics<parallel>], iteration_bounds = array<i64: 1>, scalar_prefetch = 0 : i64, scratch_operands = 0 : i64, tpu.core_type = #tpu.core_type<tc>, window_params = [{transform_indices = @transform_0, window_bounds = array<i64: 8, 16>}, {pipeline_mode = #tpu.pipeline_mode<synchronous>, transform_indices = @transform_1, window_bounds = array<i64: 16, 128>}, {pipeline_mode = #tpu.pipeline_mode<synchronous>, transform_indices = @transform_2, window_bounds = array<i64: 1, 128>}, {pipeline_mode = #tpu.pipeline_mode<synchronous>, transform_indices = @transform_3, window_bounds = array<i64: 128, 128>}, {pipeline_mode = #tpu.pipeline_mode<synchronous>, transform_indices = @transform_4, window_bounds = array<i64: 1, 128>}, {pipeline_mode = #tpu.pipeline_mode<synchronous>, transform_indices = @transform_5, window_bounds = array<i64: 128, 128>}, {pipeline_mode = #tpu.pipeline_mode<synchronous>, transform_indices = @transform_6, window_bounds = array<i64: 1, 128>}, {transform_indices = @transform_7, window_bounds = array<i64: 8, 128>}]} {
    %c0 = arith.constant 0 : index
    %c0_0 = arith.constant 0 : index
    %0 = vector.load %arg1[%c0, %c0_0] : memref<8x16xf32, #tpu.memory_space<vmem>>, vector<8x16xf32>
    %c0_1 = arith.constant 0 : index
    %c0_2 = arith.constant 0 : index
    %1 = vector.load %arg2[%c0_1, %c0_2] : memref<16x128xf32, #tpu.memory_space<vmem>>, vector<16x128xf32>
    %cst = arith.constant dense<0.000000e+00> : vector<8x128xf32>
    %2 = tpu.matmul %0, %1, %cst {dimension_numbers = #tpu.dot_dimension_numbers<[1], [0], [0], [1], [0, 0, 1, 1], [], []>} : vector<8x16xf32>, vector<16x128xf32>, vector<8x128xf32> -> vector<8x128xf32>
    %c0_3 = arith.constant 0 : index
    %c0_4 = arith.constant 0 : index
    %3 = vector.load %arg3[%c0_3, %c0_4] : memref<1x128xf32, #tpu.memory_space<vmem>>, vector<1x128xf32>
    %4 = vector.broadcast %3 : vector<1x128xf32> to vector<8x128xf32>
    %5 = arith.addf %2, %4 : vector<8x128xf32>
    %cst_5 = arith.constant 0.000000e+00 : f32
    %6 = vector.broadcast %cst_5 : f32 to vector<8x128xf32>
    %7 = arith.maximumf %5, %6 : vector<8x128xf32>
    %8 = math.absf %5 : vector<8x128xf32>
    %cst_6 = arith.constant 0.000000e+00 : f32
    %9 = vector.broadcast %cst_6 : f32 to vector<8x128xf32>
    %10 = arith.subf %9, %8 : vector<8x128xf32>
    %11 = math.exp %10 : vector<8x128xf32>
    %cst_7 = arith.constant 1.000000e+00 : f32
    %12 = vector.broadcast %cst_7 : f32 to vector<8x128xf32>
    %13 = arith.addf %11, %12 : vector<8x128xf32>
    %14 = math.log %13 : vector<8x128xf32>
    %15 = arith.addf %7, %14 : vector<8x128xf32>
    %c0_8 = arith.constant 0 : index
    %c0_9 = arith.constant 0 : index
    %16 = vector.load %arg4[%c0_8, %c0_9] : memref<128x128xf32, #tpu.memory_space<vmem>>, vector<128x128xf32>
    %cst_10 = arith.constant dense<0.000000e+00> : vector<8x128xf32>
    %17 = tpu.matmul %15, %16, %cst_10 {dimension_numbers = #tpu.dot_dimension_numbers<[1], [0], [0], [1], [0, 0, 1, 1], [], []>} : vector<8x128xf32>, vector<128x128xf32>, vector<8x128xf32> -> vector<8x128xf32>
    %c0_11 = arith.constant 0 : index
    %c0_12 = arith.constant 0 : index
    %18 = vector.load %arg5[%c0_11, %c0_12] : memref<1x128xf32, #tpu.memory_space<vmem>>, vector<1x128xf32>
    %19 = vector.broadcast %18 : vector<1x128xf32> to vector<8x128xf32>
    %20 = arith.addf %17, %19 : vector<8x128xf32>
    %cst_13 = arith.constant 0.000000e+00 : f32
    %21 = vector.broadcast %cst_13 : f32 to vector<8x128xf32>
    %22 = arith.maximumf %20, %21 : vector<8x128xf32>
    %23 = math.absf %20 : vector<8x128xf32>
    %cst_14 = arith.constant 0.000000e+00 : f32
    %24 = vector.broadcast %cst_14 : f32 to vector<8x128xf32>
    %25 = arith.subf %24, %23 : vector<8x128xf32>
    %26 = math.exp %25 : vector<8x128xf32>
    %cst_15 = arith.constant 1.000000e+00 : f32
    %27 = vector.broadcast %cst_15 : f32 to vector<8x128xf32>
    %28 = arith.addf %26, %27 : vector<8x128xf32>
    %29 = math.log %28 : vector<8x128xf32>
    %30 = arith.addf %22, %29 : vector<8x128xf32>
    %c0_16 = arith.constant 0 : index
    %c0_17 = arith.constant 0 : index
    %31 = vector.load %arg6[%c0_16, %c0_17] : memref<128x128xf32, #tpu.memory_space<vmem>>, vector<128x128xf32>
    %cst_18 = arith.constant dense<0.000000e+00> : vector<8x128xf32>
    %32 = tpu.matmul %30, %31, %cst_18 {dimension_numbers = #tpu.dot_dimension_numbers<[1], [0], [0], [1], [0, 0, 1, 1], [], []>} : vector<8x128xf32>, vector<128x128xf32>, vector<8x128xf32> -> vector<8x128xf32>
    %c0_19 = arith.constant 0 : index
    %c0_20 = arith.constant 0 : index
    %33 = vector.load %arg7[%c0_19, %c0_20] : memref<1x128xf32, #tpu.memory_space<vmem>>, vector<1x128xf32>
    %34 = vector.broadcast %33 : vector<1x128xf32> to vector<8x128xf32>
    %35 = arith.addf %32, %34 : vector<8x128xf32>
    %c0_21 = arith.constant 0 : index
    %c0_22 = arith.constant 0 : index
    %36 = vector.load %arg8[%c0_21, %c0_22] : memref<8x128xf32, #tpu.memory_space<vmem>>, vector<8x128xf32>
    tpu.vector_store %arg8[%c0_21, %c0_22], %35 {strides = array<i32>} : memref<8x128xf32, #tpu.memory_space<vmem>>, vector<8x128xf32>,
    return
  }
  func.func @transform_0(%arg0: i32) -> (i32, i32) {
    %c0_i32 = arith.constant 0 : i32
    %c0_i32_0 = arith.constant 0 : i32
    return %arg0, %c0_i32 : i32, i32
  }
  func.func @transform_1(%arg0: i32) -> (i32, i32) {
    %c0_i32 = arith.constant 0 : i32
    %c0_i32_0 = arith.constant 0 : i32
    %c0_i32_1 = arith.constant 0 : i32
    return %c0_i32, %c0_i32_0 : i32, i32
  }
  func.func @transform_2(%arg0: i32) -> (i32, i32) {
    %c0_i32 = arith.constant 0 : i32
    %c0_i32_0 = arith.constant 0 : i32
    %c0_i32_1 = arith.constant 0 : i32
    return %c0_i32, %c0_i32_0 : i32, i32
  }
  func.func @transform_3(%arg0: i32) -> (i32, i32) {
    %c0_i32 = arith.constant 0 : i32
    %c0_i32_0 = arith.constant 0 : i32
    %c0_i32_1 = arith.constant 0 : i32
    return %c0_i32, %c0_i32_0 : i32, i32
  }
  func.func @transform_4(%arg0: i32) -> (i32, i32) {
    %c0_i32 = arith.constant 0 : i32
    %c0_i32_0 = arith.constant 0 : i32
    %c0_i32_1 = arith.constant 0 : i32
    return %c0_i32, %c0_i32_0 : i32, i32
  }
  func.func @transform_5(%arg0: i32) -> (i32, i32) {
    %c0_i32 = arith.constant 0 : i32
    %c0_i32_0 = arith.constant 0 : i32
    %c0_i32_1 = arith.constant 0 : i32
    return %c0_i32, %c0_i32_0 : i32, i32
  }
  func.func @transform_6(%arg0: i32) -> (i32, i32) {
    %c0_i32 = arith.constant 0 : i32
    %c0_i32_0 = arith.constant 0 : i32
    %c0_i32_1 = arith.constant 0 : i32
    return %c0_i32, %c0_i32_0 : i32, i32
  }
  func.func @transform_7(%arg0: i32) -> (i32, i32) {
    %c0_i32 = arith.constant 0 : i32
    %c0_i32_0 = arith.constant 0 : i32
    return %arg0, %c0_i32 : i32, i32
  }
}

</mosaic_0001>

<llo_original>
// kernel: tpu_custom_call.1
$region0: #{tpu_custom_call.1}
  #allocation0 [shape = 'u32[]', space=smem, size = 0x4, offset = 0x4, fixed_abs, tag = 'smem constant byte address 0x4 - core index']
  #allocation1 [shape = 'u32[72,128]{1,0:T(1,128)}', space=vmem, size = 0x9000, scoped, tag = 'internal scratch']
  %s0 = inlined_call_operand.hbm [shape: f32[8,16], index: 0, kind: input, shape index: {}]
  %s1 = inlined_call_operand.hbm [shape: f32[16,128], index: 1, kind: input, shape index: {}]
  %s2 = inlined_call_operand.vmem [shape: f32[1,128], index: 2, kind: input, shape index: {}]
  %s3 = inlined_call_operand.hbm [shape: f32[128,128], index: 3, kind: input, shape index: {}]
  %s4 = inlined_call_operand.vmem [shape: f32[1,128], index: 4, kind: input, shape index: {}]
  %s5 = inlined_call_operand.hbm [shape: f32[128,128], index: 5, kind: input, shape index: {}]
  %s6 = inlined_call_operand.vmem [shape: f32[1,128], index: 6, kind: input, shape index: {}]
  %s7 = inlined_call_operand.hbm [shape: f32[8,128], index: 7, kind: output, shape index: {}]
  %s8 = sld [smem:[#allocation0]]
  $region54: #{tpu_custom_call.1} parent=0
    _
  %s10 = ssub.s32 1, %s8
  %s11 = scalar_select 0, %s10, %s8
  $region1: #{tpu_custom_call.1} parent=0
    #allocation2 [shape = 'u8[4096]{0}', space=vmem, size = 0x1000, scoped, tag = 'input window, operand 0, single buffered']
    #allocation3 [shape = 's32[1]{0}', space=sflag, size = 0x4, scoped, tag = 'scoped memory for tpu_custom_call.1']
    #allocation4 [shape = 's32[1]{0}', space=sflag, size = 0x4, scoped, tag = 'scoped memory for tpu_custom_call.1']
    #allocation5 [shape = 'u8[8192]{0}', space=vmem, size = 0x2000, scoped, tag = 'input window, operand 1, single buffered']
    #allocation6 [shape = 's32[1]{0}', space=sflag, size = 0x4, scoped, tag = 'scoped memory for tpu_custom_call.1']
    #allocation7 [shape = 'u8[65536]{0}', space=vmem, size = 0x10000, scoped, tag = 'input window, operand 3, single buffered']
    #allocation8 [shape = 'u8[65536]{0}', space=vmem, size = 0x10000, scoped, tag = 'input window, operand 5, single buffered']
    #allocation9 [shape = 's32[1]{0}', space=sflag, size = 0x4, scoped, tag = 'scoped memory for tpu_custom_call.1']
    #allocation10 [shape = 'u8[4096]{0}', space=vmem, size = 0x1000, scoped, tag = 'output window, operand 0, single buffered']
    %12 = vsyncpa [#allocation3], 0
    %13 = vsyncpa [#allocation6], 0
    %14 = vsyncpa [#allocation9], 0
    %15 = vsyncpa [#allocation4], 0
    // Predicated region
    $region2: #{tpu_custom_call.1} parent=1 // pred_check
      _
    $region3: #{tpu_custom_call.1} parent=1 // pred_check_branch
      %17 = sbr.rel (0) target = $region5
    $region4: #{tpu_custom_call.1} parent=1 // pred_region
      %19 = vsyncadd [#allocation3], 0
      %s21 = sshll.u32 %s0, 4
      %s22 = int_to_ptr.hbm [resolvable:$true] %s21
      %s23 = sshll.u32 [#allocation2], 4
      %s24 = int_to_ptr.vmem [resolvable:$true] %s23
      %26 = dma.hbm_to_vmem [thread:$0]  %s22, 128, %s24, [#allocation3]
    $region5: #{tpu_custom_call.1} parent=1 // pred_fallthru
      _
    // Predicated region
    $region6: #{tpu_custom_call.1} parent=1 // pred_check
      _
    $region7: #{tpu_custom_call.1} parent=1 // pred_check_branch
      %28 = sbr.rel (0) target = $region9
    $region8: #{tpu_custom_call.1} parent=1 // pred_region
      %30 = vsyncadd [#allocation6], 0
      %s31 = sshll.u32 %s1, 4
      %s32 = int_to_ptr.hbm [resolvable:$true] %s31
      %s33 = sshll.u32 [#allocation5], 4
      %s34 = int_to_ptr.vmem [resolvable:$true] %s33
      %39 = dma.hbm_to_vmem [thread:$0]  %s32, 256, %s34, [#allocation6], 128, 128, 8
    $region9: #{tpu_custom_call.1} parent=1 // pred_fallthru
      _
    // Predicated region
    $region10: #{tpu_custom_call.1} parent=1 // pred_check
      _
    $region11: #{tpu_custom_call.1} parent=1 // pred_check_branch
      %41 = sbr.rel (0) target = $region13
    $region12: #{tpu_custom_call.1} parent=1 // pred_region
      _
    $region13: #{tpu_custom_call.1} parent=1 // pred_fallthru
      _
    // Predicated region
    $region14: #{tpu_custom_call.1} parent=1 // pred_check
      _
    $region15: #{tpu_custom_call.1} parent=1 // pred_check_branch
      %43 = sbr.rel (0) target = $region17
    $region16: #{tpu_custom_call.1} parent=1 // pred_region
      %45 = vsyncadd [#allocation6], 0
      %s46 = sshll.u32 %s3, 4
      %s47 = int_to_ptr.hbm [resolvable:$true] %s46
      %s48 = sshll.u32 [#allocation7], 4
      %s49 = int_to_ptr.vmem [resolvable:$true] %s48
      %54 = dma.hbm_to_vmem [thread:$0]  %s47, 2048, %s49, [#allocation6], 128, 128, 8
    $region17: #{tpu_custom_call.1} parent=1 // pred_fallthru
      _
    // Predicated region
    $region18: #{tpu_custom_call.1} parent=1 // pred_check
      _
    $region19: #{tpu_custom_call.1} parent=1 // pred_check_branch
      %56 = sbr.rel (0) target = $region21
    $region20: #{tpu_custom_call.1} parent=1 // pred_region
      _
    $region21: #{tpu_custom_call.1} parent=1 // pred_fallthru
      _
    // Predicated region
    $region22: #{tpu_custom_call.1} parent=1 // pred_check
      _
    $region23: #{tpu_custom_call.1} parent=1 // pred_check_branch
      %58 = sbr.rel (0) target = $region25
    $region24: #{tpu_custom_call.1} parent=1 // pred_region
      %60 = vsyncadd [#allocation9], 0
      %s61 = sshll.u32 %s5, 4
      %s62 = int_to_ptr.hbm [resolvable:$true] %s61
      %s63 = sshll.u32 [#allocation8], 4
      %s64 = int_to_ptr.vmem [resolvable:$true] %s63
      %69 = dma.hbm_to_vmem [thread:$0]  %s62, 2048, %s64, [#allocation9], 128, 128, 8
    $region25: #{tpu_custom_call.1} parent=1 // pred_fallthru
      _
    // Predicated region
    $region26: #{tpu_custom_call.1} parent=1 // pred_check
      _
    $region27: #{tpu_custom_call.1} parent=1 // pred_check_branch
      %71 = sbr.rel (0) target = $region29
    $region28: #{tpu_custom_call.1} parent=1 // pred_region
      _
    $region29: #{tpu_custom_call.1} parent=1 // pred_fallthru
      _
    // Predicated region
    $region30: #{tpu_custom_call.1} parent=1 // pred_check
      _
    $region31: #{tpu_custom_call.1} parent=1 // pred_check_branch
      %73 = sbr.rel (0) target = $region33
    $region32: #{tpu_custom_call.1} parent=1 // pred_region
      %75 = dma.done [#allocation3], 128
    $region33: #{tpu_custom_call.1} parent=1 // pred_fallthru
      _
    // Predicated region
    $region34: #{tpu_custom_call.1} parent=1 // pred_check
      _
    $region35: #{tpu_custom_call.1} parent=1 // pred_check_branch
      %77 = sbr.rel (0) target = $region37
    $region36: #{tpu_custom_call.1} parent=1 // pred_region
      %79 = dma.done [#allocation6], 256
    $region37: #{tpu_custom_call.1} parent=1 // pred_fallthru
      _
    // Predicated region
    $region38: #{tpu_custom_call.1} parent=1 // pred_check
      _
    $region39: #{tpu_custom_call.1} parent=1 // pred_check_branch
      %81 = sbr.rel (0) target = $region41
    $region40: #{tpu_custom_call.1} parent=1 // pred_region
      %83 = dma.done [#allocation6], 2048
    $region41: #{tpu_custom_call.1} parent=1 // pred_fallthru
      _
    // Predicated region
    $region42: #{tpu_custom_call.1} parent=1 // pred_check
      _
    $region43: #{tpu_custom_call.1} parent=1 // pred_check_branch
      %85 = sbr.rel (0) target = $region45
    $region44: #{tpu_custom_call.1} parent=1 // pred_region
      %87 = dma.done [#allocation9], 2048
    $region45: #{tpu_custom_call.1} parent=1 // pred_fallthru
      _
    %v88 = vld [vmem:[#allocation2] sm:$0xff]
    %v89 = vld [vmem:[#allocation5] sm:$0xff]
    %v90 = vld [vmem:[#allocation5 + $0x8] sm:$0xff]
    %v91 = vld [vmem:[%s2] sm:$0x1]
    %v93 = vperm.slane %v91, 0
    %vm95 = vcmask 130048
    %v97 = vsel %vm95, %v88, 0
    %99 = vmatpush.msra.mxu0 0.0
    %100 = vmatpush.msra.mxu0 0.0
    %101 = vmatpush.msra.mxu0 0.0
    %102 = vmatpush.msra.mxu0 0.0
    %103 = vmatpush.msra.mxu0 0.0
    %104 = vmatpush.msra.mxu0 0.0
    %105 = vmatpush.msra.mxu0 0.0
    %106 = vmatpush.msra.mxu0 0.0
    %107 = vmatpush.msra.mxu0 0.0
    %108 = vmatpush.msra.mxu0 0.0
    %109 = vmatpush.msra.mxu0 0.0
    %110 = vmatpush.msra.mxu0 0.0
    %111 = vmatpush.msra.mxu0 0.0
    %112 = vmatpush.msra.mxu0 0.0
    %113 = vmatpush.msra.mxu0 %v90
    %114 = vmatpush.msra.mxu0 %v89
    %115 = vmatmul.f32.gmra.mxu0 %v97
    %v116 = vpop.f32.mrf.mxu0
    %v117 = vadd.f32 %v93, %v116
    %118 = vdwg.mxu0
    %v119 = vmax.f32 %v117, 0.0
    %v120 = vand.u32 2147483647, %v117
    %v121 = vsub.f32 0.0, %v120
    %v122 = vmul.f32 %v121, 1.442695
    %v123 = vpow.pop %v122
    %v124 = vadd.f32 %v123, 1.0
    %v125 = vlog2.pop %v124
    %v126 = vmul.f32 %v125, 0.6931472
    %v127 = vadd.f32 %v119, %v126
    %v128 = vld [vmem:[#allocation7] sm:$0xff]
    %v129 = vld [vmem:[#allocation7 + $0x8] sm:$0xff]
    %v130 = vld [vmem:[#allocation7 + $0x10] sm:$0xff]
    %v131 = vld [vmem:[#allocation7 + $0x18] sm:$0xff]
    %v132 = vld [vmem:[#allocation7 + $0x20] sm:$0xff]
    %v133 = vld [vmem:[#allocation7 + $0x28] sm:$0xff]
    %v134 = vld [vmem:[#allocation7 + $0x30] sm:$0xff]
    %v135 = vld [vmem:[#allocation7 + $0x38] sm:$0xff]
    %v136 = vld [vmem:[#allocation7 + $0x40] sm:$0xff]
    %v137 = vld [vmem:[#allocation7 + $0x48] sm:$0xff]
    %v138 = vld [vmem:[#allocation7 + $0x50] sm:$0xff]
    %v139 = vld [vmem:[#allocation7 + $0x58] sm:$0xff]
    %v140 = vld [vmem:[#allocation7 + $0x60] sm:$0xff]
    %v141 = vld [vmem:[#allocation7 + $0x68] sm:$0xff]
    %v142 = vld [vmem:[#allocation7 + $0x70] sm:$0xff]
    %v143 = vld [vmem:[#allocation7 + $0x78] sm:$0xff]
    %v144 = vld [vmem:[%s4] sm:$0x1]
    %v146 = vperm.slane %v144, 0
    %148 = vmatpush.msra.mxu0 %v143
    %149 = vmatpush.msra.mxu0 %v142
    %150 = vmatpush.msra.mxu0 %v141
    %151 = vmatpush.msra.mxu0 %v140
    %152 = vmatpush.msra.mxu0 %v139
    %153 = vmatpush.msra.mxu0 %v138
    %154 = vmatpush.msra.mxu0 %v137
    %155 = vmatpush.msra.mxu0 %v136
    %156 = vmatpush.msra.mxu0 %v135
    %157 = vmatpush.msra.mxu0 %v134
    %158 = vmatpush.msra.mxu0 %v133
    %159 = vmatpush.msra.mxu0 %v132
    %160 = vmatpush.msra.mxu0 %v131
    %161 = vmatpush.msra.mxu0 %v130
    %162 = vmatpush.msra.mxu0 %v129
    %163 = vmatpush.msra.mxu0 %v128
    %164 = vmatmul.f32.gmra.mxu0 %v127
    %v165 = vpop.f32.mrf.mxu0
    %v166 = vadd.f32 %v146, %v165
    %167 = vdwg.mxu0
    %v168 = vmax.f32 %v166, 0.0
    %v169 = vand.u32 2147483647, %v166
    %v170 = vsub.f32 0.0, %v169
    %v171 = vmul.f32 %v170, 1.442695
    %v172 = vpow.pop %v171
    %v173 = vadd.f32 %v172, 1.0
    %v174 = vlog2.pop %v173
    %v175 = vmul.f32 %v174, 0.6931472
    %v176 = vadd.f32 %v168, %v175
    %v177 = vld [vmem:[#allocation8] sm:$0xff]
    %v178 = vld [vmem:[#allocation8 + $0x8] sm:$0xff]
    %v179 = vld [vmem:[#allocation8 + $0x10] sm:$0xff]
    %v180 = vld [vmem:[#allocation8 + $0x18] sm:$0xff]
    %v181 = vld [vmem:[#allocation8 + $0x20] sm:$0xff]
    %v182 = vld [vmem:[#allocation8 + $0x28] sm:$0xff]
    %v183 = vld [vmem:[#allocation8 + $0x30] sm:$0xff]
    %v184 = vld [vmem:[#allocation8 + $0x38] sm:$0xff]
    %v185 = vld [vmem:[#allocation8 + $0x40] sm:$0xff]
    %v186 = vld [vmem:[#allocation8 + $0x48] sm:$0xff]
    %v187 = vld [vmem:[#allocation8 + $0x50] sm:$0xff]
    %v188 = vld [vmem:[#allocation8 + $0x58] sm:$0xff]
    %v189 = vld [vmem:[#allocation8 + $0x60] sm:$0xff]
    %v190 = vld [vmem:[#allocation8 + $0x68] sm:$0xff]
    %v191 = vld [vmem:[#allocation8 + $0x70] sm:$0xff]
    %v192 = vld [vmem:[#allocation8 + $0x78] sm:$0xff]
    %v193 = vld [vmem:[%s6] sm:$0x1]
    %v195 = vperm.slane %v193, 0
    %197 = vmatpush.msra.mxu0 %v192
    %198 = vmatpush.msra.mxu0 %v191
    %199 = vmatpush.msra.mxu0 %v190
    %200 = vmatpush.msra.mxu0 %v189
    %201 = vmatpush.msra.mxu0 %v188
    %202 = vmatpush.msra.mxu0 %v187
    %203 = vmatpush.msra.mxu0 %v186
    %204 = vmatpush.msra.mxu0 %v185
    %205 = vmatpush.msra.mxu0 %v184
    %206 = vmatpush.msra.mxu0 %v183
    %207 = vmatpush.msra.mxu0 %v182
    %208 = vmatpush.msra.mxu0 %v181
    %209 = vmatpush.msra.mxu0 %v180
    %210 = vmatpush.msra.mxu0 %v179
    %211 = vmatpush.msra.mxu0 %v178
    %212 = vmatpush.msra.mxu0 %v177
    %213 = vmatmul.f32.gmra.mxu0 %v176
    %v214 = vpop.f32.mrf.mxu0
    %v215 = vadd.f32 %v195, %v214
    %216 = vdwg.mxu0
    %217 = vst [vmem:[#allocation10] sm:$0xff] %v215
    // Predicated region
    $region46: #{tpu_custom_call.1} parent=1 // pred_check
      _
    $region47: #{tpu_custom_call.1} parent=1 // pred_check_branch
      %219 = sbr.rel (0) target = $region49
    $region48: #{tpu_custom_call.1} parent=1 // pred_region
      %221 = vsyncadd [#allocation4], 0
      %s223 = sshll.u32 [#allocation10], 4
      %s224 = int_to_ptr.vmem [resolvable:$true] %s223
      %s225 = sshll.u32 %s7, 4
      %s226 = int_to_ptr.hbm [resolvable:$true] %s225
      %228 = dma.vmem_to_hbm [thread:$0]  %s224, 128, %s226, [#allocation4]
    $region49: #{tpu_custom_call.1} parent=1 // pred_fallthru
      _
    // Predicated region
    $region50: #{tpu_custom_call.1} parent=1 // pred_check
      _
    $region51: #{tpu_custom_call.1} parent=1 // pred_check_branch
      %230 = sbr.rel (0) target = $region53
    $region52: #{tpu_custom_call.1} parent=1 // pred_region
      %232 = dma.done [#allocation4], 128
    $region53: #{tpu_custom_call.1} parent=1 // pred_fallthru
      _
    %233 = vsyncpa [#allocation3], 1
    %234 = vsyncpa [#allocation6], 1
    %235 = vsyncpa [#allocation9], 1
    %236 = vsyncpa [#allocation4], 1

</llo_original>
